<compile_context>
chip_gen: v5e
topology: v5e:2x2
jax: 0.10.0
libtpu: 0.0.40
codegen_flags: <defaults>
</compile_context>

<pallas_src>
import jax
import jax.numpy as jnp
from jax.experimental import pallas as pl
from jax.experimental.pallas import tpu as pltpu

_LANES = 128
_MiB = 1024 * 1024


def _mixedop_kernel(w_ref,      # SMEM (2,)              architecture weights (prefetched)
                    x_ref,      # VMEM (B, tile_k)        batch_x tile (compute dtype)
                    heads_ref,  # VMEM (2, tile_k, tile_n) [trans | srnn] head tiles
                    out_ref,    # VMEM (B, tile_n)        lane-dense mixed output tile (f32)
                    acc_ref):   # VMEM (B, tile_n) f32    K-reduction accumulator
    k = pl.program_id(1)

    @pl.when(k == 0)
    def _init():
        acc_ref[...] = jnp.zeros_like(acc_ref)

    w0 = w_ref[0]
    w1 = w_ref[1]
    # Fold the architecture weights into the candidate heads on the VPU.
    # w0/w1 are f32 SMEM scalars, so the fold is performed in f32 even when the
    # heads are streamed as bf16; the folded tile is then cast to the MXU input
    # dtype.  Exact for linear candidates: (x@A)*w0 + (x@B)*w1 == x@(A*w0+B*w1).
    w_mix = (heads_ref[0] * w0 + heads_ref[1] * w1).astype(x_ref.dtype)

    acc_ref[...] += jnp.dot(x_ref[...], w_mix, preferred_element_type=jnp.float32)

    @pl.when(k == pl.num_programs(1) - 1)
    def _finalize():
        out_ref[...] = acc_ref[...].astype(out_ref.dtype)


def prepare_mixed_heads(wp_trans, wp_srnn, wc_trans, wc_srnn,
                        compute_dtype=jnp.bfloat16):
    """One-time (param-init / cache time) layout bake of the candidate heads.

    Concatenates [prediction | coefficient] heads along N per candidate, stacks
    the two candidates, zero-pads N to a 128-lane multiple (lane-dense output
    slab, unmasked vst) and casts to the MXU streaming dtype.
    """
    H = wp_trans.shape[1]
    C = wc_trans.shape[1]
    N = H + C
    n_pad = ((N + _LANES - 1) // _LANES) * _LANES
    head_t = jnp.concatenate([wp_trans, wc_trans], axis=1)   # (T, N)
    head_s = jnp.concatenate([wp_srnn, wc_srnn], axis=1)     # (T, N)
    heads = jnp.stack([head_t, head_s], axis=0)               # (2, T, N)
    if n_pad != N:
        heads = jnp.pad(heads, ((0, 0), (0, 0), (0, n_pad - N)))
    return heads.astype(compute_dtype), H, C


def _pick_tile_n(n_pad):
    # Largest 128-multiple <= 512 that divides n_pad (amortize per-step cost,
    # stay well inside v7x's 64 MiB VMEM).
    for cand in (512, 384, 256, 128):
        if n_pad % cand == 0:
            return cand
    return n_pad


def _pick_tile_k(t):
    # Single K step for small T; 256-deep K tiles (MXU contraction depth on
    # v6e/v7x, 2x128 on v5e) when T is large and evenly divisible.
    if t > 1024 and t % 256 == 0:
        return 256
    return t


def mixed_op_forward(batch_x, batch_y, weights, heads, H, C):
    """Spectral-transformer branch of MixedOp.forward.

    `heads` is the pre-baked (2, T, Npad) slab from `prepare_mixed_heads`.
    batch_y is accepted for signature fidelity but is not consumed by the
    synthetic linear candidate heads.
    """
    del batch_y  # unused by synthetic candidate ops
    B, T = batch_x.shape
    N = H + C
    n_pad = heads.shape[-1]
    compute_dtype = heads.dtype
    itemsize = jnp.dtype(compute_dtype).itemsize

    tile_n = _pick_tile_n(n_pad)
    tile_k = _pick_tile_k(T)
    grid = (n_pad // tile_n, pl.cdiv(T, tile_k))

    w_vec = weights[0, :2].astype(jnp.float32)       # this edge's arch weights
    x = batch_x.astype(compute_dtype)

    # VMEM budget: double-buffered heads/x/out tiles + f32 accumulator, with
    # 2x headroom, capped below v7x's 64 MiB physical VMEM.
    vmem_need = (2 * 2 * tile_k * tile_n * itemsize      # heads (2 pipeline bufs)
                 + 2 * B * tile_k * itemsize             # x     (2 pipeline bufs)
                 + 2 * B * tile_n * 4                    # out   (2 pipeline bufs)
                 + B * tile_n * 4)                       # acc scratch
    vmem_limit = int(min(max(2 * vmem_need, 4 * _MiB), 48 * _MiB))

    cost = pl.CostEstimate(
        flops=2 * B * T * n_pad + 3 * T * n_pad,          # matmul + VPU fold
        transcendentals=0,
        bytes_accessed=(B * T * itemsize + 2 * T * n_pad * itemsize
                        + B * n_pad * 4 + 2 * 4),
    )

    out = pl.pallas_call(
        _mixedop_kernel,
        out_shape=jax.ShapeDtypeStruct((B, n_pad), jnp.float32),
        grid_spec=pltpu.PrefetchScalarGridSpec(
            num_scalar_prefetch=1,                        # (2,) arch weights -> SMEM
            grid=grid,                                    # (N tiles, K tiles)
            in_specs=[
                pl.BlockSpec((B, tile_k), lambda j, k, w: (0, k)),            # x
                pl.BlockSpec((2, tile_k, tile_n), lambda j, k, w: (0, k, j)),  # heads
            ],
            out_specs=pl.BlockSpec((B, tile_n), lambda j, k, w: (0, j)),
            scratch_shapes=[pltpu.VMEM((B, tile_n), jnp.float32)],
        ),
        compiler_params=pltpu.CompilerParams(
            dimension_semantics=("parallel", "arbitrary"),  # N shards across TCs (v7x)
            vmem_limit_bytes=vmem_limit,
        ),
        cost_estimate=cost,
    )(w_vec, x, heads)

    out1 = out[:, :H]        # mixed prediction        (B, H)
    out2 = out[:, H:N]       # mixed fourier coeffs    (B, C)
    return out1, out2


if __name__ == "__main__":
    key = jax.random.PRNGKey(0)
    kx, ky, kw, k0, k1, k2, k3 = jax.random.split(key, 7)

    B, T, H, C = 8, 32, 16, 32   # batch, input len, forecast horizon, n coeffs

    batch_x = jax.random.normal(kx, (B, T), dtype=jnp.float32)
    batch_y = jax.random.normal(ky, (B, H), dtype=jnp.float32)

    # DARTS architecture weights for this edge: weights[0][0], weights[0][1]
    arch_logits = jax.random.normal(kw, (1, 2), dtype=jnp.float32)
    weights = jax.nn.softmax(arch_logits, axis=-1)

    # deterministic synthetic parameters for the two candidate ops
    wp_trans = jax.random.normal(k0, (T, H), dtype=jnp.float32) * 0.1
    wp_srnn  = jax.random.normal(k1, (T, H), dtype=jnp.float32) * 0.1
    wc_trans = jax.random.normal(k2, (T, C), dtype=jnp.float32) * 0.1
    wc_srnn  = jax.random.normal(k3, (T, C), dtype=jnp.float32) * 0.1

    # reference in plain JAX (matches the original MixedOp math)
    pred_t = batch_x @ wp_trans
    pred_s = batch_x @ wp_srnn
    fc_t   = batch_x @ wc_trans
    fc_s   = batch_x @ wc_srnn
    ref1 = pred_t * weights[0, 0] + pred_s * weights[0, 1]
    ref2 = fc_t * weights[0, 0] + fc_s * weights[0, 1]

    # --- production config: bf16 streaming, f32 fold + accumulation ---------
    heads_bf16, H_, C_ = prepare_mixed_heads(wp_trans, wp_srnn, wc_trans, wc_srnn,
                                             compute_dtype=jnp.bfloat16)
    out_1, out_2 = mixed_op_forward(batch_x, batch_y, weights, heads_bf16, H_, C_)
    jax.block_until_ready((out_1, out_2))
    assert jnp.allclose(out_1, ref1, atol=2e-2, rtol=2e-2), "bf16 out_1 mismatch"
    assert jnp.allclose(out_2, ref2, atol=2e-2, rtol=2e-2), "bf16 out_2 mismatch"

    # --- exact-parity config: f32 end-to-end ---------------------------------
    heads_f32, _, _ = prepare_mixed_heads(wp_trans, wp_srnn, wc_trans, wc_srnn,
                                          compute_dtype=jnp.float32)
    out_1f, out_2f = mixed_op_forward(batch_x, batch_y, weights, heads_f32, H_, C_)
    jax.block_until_ready((out_1f, out_2f))
    assert jnp.allclose(out_1f, ref1, atol=1e-4), "f32 out_1 mismatch"
    assert jnp.allclose(out_2f, ref2, atol=1e-4), "f32 out_2 mismatch"

    print("KERNEL_OK")
</pallas_src>

<mosaic_0001>
module attributes {stable_mosaic.version = 11 : i64} {
  func.func @_mixedop_kernel(%arg0: i32, %arg1: i32, %arg2: memref<2xf32, #tpu.memory_space<smem>>, %arg3: memref<8x32xbf16, #tpu.memory_space<vmem>>, %arg4: memref<2x32x128xbf16, #tpu.memory_space<vmem>>, %arg5: memref<8x128xf32, #tpu.memory_space<vmem>>, %arg6: memref<8x128xf32, #tpu.memory_space<vmem>>) attributes {dimension_semantics = [#tpu.dimension_semantics<parallel>, #tpu.dimension_semantics<arbitrary>], iteration_bounds = array<i64: 1, 1>, scalar_prefetch = 1 : i64, scratch_operands = 1 : i64, tpu.core_type = #tpu.core_type<tc>, window_params = [{transform_indices = @transform_0, window_bounds = array<i64: 8, 32>}, {transform_indices = @transform_1, window_bounds = array<i64: 2, 32, 128>}, {transform_indices = @transform_2, window_bounds = array<i64: 8, 128>}]} {
    %c0_i32 = arith.constant 0 : i32
    %0 = arith.cmpi eq, %arg1, %c0_i32 : i32
    %1 = arith.extui %0 : i1 to i32
    %c0_i32_0 = arith.constant 0 : i32
    %2 = arith.cmpi ne, %1, %c0_i32_0 : i32
    scf.if %2 {
      %cst_15 = arith.constant 0.000000e+00 : f32
      %25 = vector.broadcast %cst_15 : f32 to vector<8x128xf32>
      %c0_16 = arith.constant 0 : index
      %c0_17 = arith.constant 0 : index
      %26 = vector.load %arg6[%c0_16, %c0_17] : memref<8x128xf32, #tpu.memory_space<vmem>>, vector<8x128xf32>
      tpu.vector_store %arg6[%c0_16, %c0_17], %25 {strides = array<i32>} : memref<8x128xf32, #tpu.memory_space<vmem>>, vector<8x128xf32>,
    } else {
    }
    %c0 = arith.constant 0 : index
    %3 = memref.load %arg2[%c0] : memref<2xf32, #tpu.memory_space<smem>>
    %c1 = arith.constant 1 : index
    %4 = memref.load %arg2[%c1] : memref<2xf32, #tpu.memory_space<smem>>
    %c0_1 = arith.constant 0 : index
    %c0_2 = arith.constant 0 : index
    %c0_3 = arith.constant 0 : index
    %5 = vector.load %arg4[%c0_1, %c0_2, %c0_3] : memref<2x32x128xbf16, #tpu.memory_space<vmem>>, vector<1x32x128xbf16>
    %6 = vector.shape_cast %5 : vector<1x32x128xbf16> to vector<32x128xbf16>
    %7 = arith.extf %6 : vector<32x128xbf16> to vector<32x128xf32>
    %8 = vector.broadcast %3 : f32 to vector<32x128xf32>
    %9 = arith.mulf %7, %8 : vector<32x128xf32>
    %c1_4 = arith.constant 1 : index
    %c0_5 = arith.constant 0 : index
    %c0_6 = arith.constant 0 : index
    %10 = vector.load %arg4[%c1_4, %c0_5, %c0_6] : memref<2x32x128xbf16, #tpu.memory_space<vmem>>, vector<1x32x128xbf16>
    %11 = vector.shape_cast %10 : vector<1x32x128xbf16> to vector<32x128xbf16>
    %12 = arith.extf %11 : vector<32x128xbf16> to vector<32x128xf32>
    %13 = vector.broadcast %4 : f32 to vector<32x128xf32>
    %14 = arith.mulf %12, %13 : vector<32x128xf32>
    %15 = arith.addf %9, %14 : vector<32x128xf32>
    %16 = arith.truncf %15 : vector<32x128xf32> to vector<32x128xbf16>
    %c0_7 = arith.constant 0 : index
    %c0_8 = arith.constant 0 : index
    %17 = vector.load %arg6[%c0_7, %c0_8] : memref<8x128xf32, #tpu.memory_space<vmem>>, vector<8x128xf32>
    %c0_9 = arith.constant 0 : index
    %c0_10 = arith.constant 0 : index
    %18 = vector.load %arg3[%c0_9, %c0_10] : memref<8x32xbf16, #tpu.memory_space<vmem>>, vector<8x32xbf16>
    %cst = arith.constant dense<0.000000e+00> : vector<8x128xf32>
    %19 = tpu.matmul %18, %16, %cst {dimension_numbers = #tpu.dot_dimension_numbers<[1], [0], [0], [1], [0, 0, 1, 1], [], []>} : vector<8x32xbf16>, vector<32x128xbf16>, vector<8x128xf32> -> vector<8x128xf32>
    %20 = arith.addf %17, %19 : vector<8x128xf32>
    %c0_11 = arith.constant 0 : index
    %c0_12 = arith.constant 0 : index
    %21 = vector.load %arg6[%c0_11, %c0_12] : memref<8x128xf32, #tpu.memory_space<vmem>>, vector<8x128xf32>
    tpu.vector_store %arg6[%c0_11, %c0_12], %20 {strides = array<i32>} : memref<8x128xf32, #tpu.memory_space<vmem>>, vector<8x128xf32>,
    %c0_i32_13 = arith.constant 0 : i32
    %22 = arith.cmpi eq, %arg1, %c0_i32_13 : i32
    %23 = arith.extui %22 : i1 to i32
    %c0_i32_14 = arith.constant 0 : i32
    %24 = arith.cmpi ne, %23, %c0_i32_14 : i32
    scf.if %24 {
      %c0_15 = arith.constant 0 : index
      %c0_16 = arith.constant 0 : index
      %25 = vector.load %arg6[%c0_15, %c0_16] : memref<8x128xf32, #tpu.memory_space<vmem>>, vector<8x128xf32>
      %c0_17 = arith.constant 0 : index
      %c0_18 = arith.constant 0 : index
      %26 = vector.load %arg5[%c0_17, %c0_18] : memref<8x128xf32, #tpu.memory_space<vmem>>, vector<8x128xf32>
      tpu.vector_store %arg5[%c0_17, %c0_18], %25 {strides = array<i32>} : memref<8x128xf32, #tpu.memory_space<vmem>>, vector<8x128xf32>,
    } else {
    }
    return
  }
  func.func @transform_0(%arg0: i32, %arg1: i32, %arg2: memref<2xf32, #tpu.memory_space<smem>>) -> (i32, i32) {
    %c0_i32 = arith.constant 0 : i32
    %c0_i32_0 = arith.constant 0 : i32
    return %c0_i32, %arg1 : i32, i32
  }
  func.func @transform_1(%arg0: i32, %arg1: i32, %arg2: memref<2xf32, #tpu.memory_space<smem>>) -> (i32, i32, i32) {
    %c0_i32 = arith.constant 0 : i32
    %c0_i32_0 = arith.constant 0 : i32
    return %c0_i32, %arg1, %arg0 : i32, i32, i32
  }
  func.func @transform_2(%arg0: i32, %arg1: i32, %arg2: memref<2xf32, #tpu.memory_space<smem>>) -> (i32, i32) {
    %c0_i32 = arith.constant 0 : i32
    %c0_i32_0 = arith.constant 0 : i32
    return %c0_i32, %arg0 : i32, i32
  }
}

</mosaic_0001>

<llo_original>
// kernel: tpu_custom_call.1
$region0: #{tpu_custom_call.1}
  #allocation0 [shape = 'u32[]', space=smem, size = 0x4, offset = 0x4, fixed_abs, tag = 'smem constant byte address 0x4 - core index']
  #allocation1 [shape = 'u32[72,128]{1,0:T(1,128)}', space=vmem, size = 0x9000, scoped, tag = 'internal scratch']
  #allocation2 [shape = 'f32[8,128]{1,0:T(8,128)}', space=vmem, size = 0x1000, scoped, tag = 'scratch operand']
  #allocation3 [shape = 's32[1]{0}', space=sflag, size = 0x4, scoped, tag = 'scoped memory for tpu_custom_call.1']
  #allocation4 [shape = 'u8[512]{0}', space=smem, size = 0x200, scoped, tag = 'prefetched SMEM operand 0']
  %s0 = inlined_call_operand.hbm [shape: f32[2], index: 0, kind: input, shape index: {}]
  %s1 = inlined_call_operand.hbm [shape: bf16[8,32], index: 1, kind: input, shape index: {}]
  %s2 = inlined_call_operand.hbm [shape: bf16[2,32,128], index: 2, kind: input, shape index: {}]
  %s3 = inlined_call_operand.hbm [shape: f32[8,128], index: 3, kind: output, shape index: {}]
  %s4 = sld [smem:[#allocation0]]
  $region34: #{tpu_custom_call.1} parent=0
    _
  %s6 = ssub.s32 1, %s4
  %s7 = scalar_select 0, %s6, %s4
  %s9 = sshll.u32 %s0, 4
  %s10 = int_to_ptr.hbm [resolvable:$true] %s9
  %12 = dma.hbm_to_smem %s10, 16, [#allocation4], [#allocation3]
  %14 = dma.done [#allocation3], 16
  %15 = sfence
  $region1: #{tpu_custom_call.1} parent=0
    #allocation5 [shape = 'u8[2048]{0}', space=vmem, size = 0x800, scoped, tag = 'input window, operand 1, single buffered']
    #allocation6 [shape = 's32[1]{0}', space=sflag, size = 0x4, scoped, tag = 'scoped memory for tpu_custom_call.1']
    #allocation7 [shape = 's32[1]{0}', space=sflag, size = 0x4, scoped, tag = 'scoped memory for tpu_custom_call.1']
    #allocation8 [shape = 'u8[16384]{0}', space=vmem, size = 0x4000, scoped, tag = 'input window, operand 2, single buffered']
    #allocation9 [shape = 's32[1]{0}', space=sflag, size = 0x4, scoped, tag = 'scoped memory for tpu_custom_call.1']
    #allocation10 [shape = 'u8[4096]{0}', space=vmem, size = 0x1000, scoped, tag = 'output window, operand 0, single buffered']
    %16 = vsyncpa [#allocation6], 0
    %17 = vsyncpa [#allocation9], 0
    %18 = vsyncpa [#allocation7], 0
    // Predicated region
    $region2: #{tpu_custom_call.1} parent=1 // pred_check
      _
    $region3: #{tpu_custom_call.1} parent=1 // pred_check_branch
      %20 = sbr.rel (0) target = $region5
    $region4: #{tpu_custom_call.1} parent=1 // pred_region
      %22 = vsyncadd [#allocation6], 0
      %s24 = sshll.u32 %s1, 4
      %s25 = int_to_ptr.hbm [resolvable:$true] %s24
      %s26 = sshll.u32 [#allocation5], 4
      %s27 = int_to_ptr.vmem [resolvable:$true] %s26
      %29 = dma.hbm_to_vmem [thread:$0]  %s25, 64, %s27, [#allocation6]
    $region5: #{tpu_custom_call.1} parent=1 // pred_fallthru
      _
    // Predicated region
    $region6: #{tpu_custom_call.1} parent=1 // pred_check
      _
    $region7: #{tpu_custom_call.1} parent=1 // pred_check_branch
      %31 = sbr.rel (0) target = $region9
    $region8: #{tpu_custom_call.1} parent=1 // pred_region
      %33 = vsyncadd [#allocation9], 0
      %s34 = sshll.u32 %s2, 4
      %s35 = int_to_ptr.hbm [resolvable:$true] %s34
      %s36 = sshll.u32 [#allocation8], 4
      %s37 = int_to_ptr.vmem [resolvable:$true] %s36
      %42 = dma.hbm_to_vmem [thread:$0]  %s35, 512, %s37, [#allocation9], 64, 64, 4
    $region9: #{tpu_custom_call.1} parent=1 // pred_fallthru
      _
    // Predicated region
    $region10: #{tpu_custom_call.1} parent=1 // pred_check
      _
    $region11: #{tpu_custom_call.1} parent=1 // pred_check_branch
      %44 = sbr.rel (0) target = $region13
    $region12: #{tpu_custom_call.1} parent=1 // pred_region
      %46 = dma.done [#allocation6], 64
    $region13: #{tpu_custom_call.1} parent=1 // pred_fallthru
      _
    // Predicated region
    $region14: #{tpu_custom_call.1} parent=1 // pred_check
      _
    $region15: #{tpu_custom_call.1} parent=1 // pred_check_branch
      %48 = sbr.rel (0) target = $region17
    $region16: #{tpu_custom_call.1} parent=1 // pred_region
      %50 = dma.done [#allocation9], 512
    $region17: #{tpu_custom_call.1} parent=1 // pred_fallthru
      _
    %p52 = scmp.eq.s32.totalorder 0, 0
    // Predicated region
    $region18: #{tpu_custom_call.1} parent=1 // pred_check
      %p53 = pneg %p52
    $region19: #{tpu_custom_call.1} parent=1 // pred_check_branch
      %55 = sbr.rel (%p53) target = $region21
    $region20: #{tpu_custom_call.1} parent=1 // pred_region
      %56 = vst [vmem:[#allocation2] sm:$0xff] 0.0
    $region21: #{tpu_custom_call.1} parent=1 // pred_fallthru
      _
    %s57 = sld [smem:[#allocation4]]
    %s58 = sld [smem:[#allocation4 + $0x1]]
    %v59 = vld [vmem:[#allocation8] sm:$0xf]
    %v60 = vld [vmem:[#allocation8 + $0x4] sm:$0xf]
    %v61 = vld [vmem:[#allocation8 + $0x8] sm:$0xf]
    %v62 = vld [vmem:[#allocation8 + $0xc] sm:$0xf]
    %v63 = vunpack.c.l.bf16 %v59
    %v64 = vunpack.c.l.bf16 %v60
    %v65 = vunpack.c.l.bf16 %v61
    %v66 = vunpack.c.l.bf16 %v62
    %v67 = vstv %s57
    %v68 = vmul.f32 %v63, %v67
    %v69 = vmul.f32 %v64, %v67
    %v70 = vmul.f32 %v65, %v67
    %v71 = vmul.f32 %v66, %v67
    %s72 = scalar_lea.vmem [#allocation8], 16
    %v73 = vld [vmem:[%s72] sm:$0xf]
    %v74 = vld [vmem:[%s72 + $0x4] sm:$0xf]
    %v75 = vld [vmem:[%s72 + $0x8] sm:$0xf]
    %v76 = vld [vmem:[%s72 + $0xc] sm:$0xf]
    %v77 = vunpack.c.l.bf16 %v73
    %v78 = vunpack.c.l.bf16 %v74
    %v79 = vunpack.c.l.bf16 %v75
    %v80 = vunpack.c.l.bf16 %v76
    %v81 = vstv %s58
    %v82 = vmul.f32 %v77, %v81
    %v83 = vmul.f32 %v78, %v81
    %v84 = vmul.f32 %v79, %v81
    %v85 = vmul.f32 %v80, %v81
    %v86 = vadd.f32 %v68, %v82
    %v87 = vadd.f32 %v69, %v83
    %v88 = vadd.f32 %v70, %v84
    %v89 = vadd.f32 %v71, %v85
    %v90 = vpack.c.bf16 %v87, %v86
    %v91 = vpack.c.bf16 %v89, %v88
    %v92 = vld [vmem:[#allocation2] sm:$0xff]
    %v93 = vld [vmem:[#allocation5] sm:$0xf]
    %vm94 = vcmask 261120
    %v96 = vsel %vm94, %v93, 0
    %98 = vmatpush.bf16.msra.mxu0 0
    %99 = vmatpush.bf16.msra.mxu0 0
    %100 = vmatpush.bf16.msra.mxu0 0
    %101 = vmatpush.bf16.msra.mxu0 0
    %102 = vmatpush.bf16.msra.mxu0 0
    %103 = vmatpush.bf16.msra.mxu0 0
    %104 = vmatpush.bf16.msra.mxu0 %v91
    %105 = vmatpush.bf16.msra.mxu0 %v90
    %106 = vmatmul.bf16.gmra.mxu0 %v96
    %v107 = vpop.f32.mrf.mxu0
    %v108 = vadd.f32 0.0, %v107
    %v109 = vpop.f32.mrf.mxu0
    %110 = vdwg.mxu0
    %v111 = vadd.f32 %v92, %v108
    %112 = vst [vmem:[#allocation2] sm:$0xff] %v111
    // Predicated region
    $region22: #{tpu_custom_call.1} parent=1 // pred_check
      %p113 = pneg %p52
    $region23: #{tpu_custom_call.1} parent=1 // pred_check_branch
      %115 = sbr.rel (%p113) target = $region25
    $region24: #{tpu_custom_call.1} parent=1 // pred_region
      %v116 = vld [vmem:[#allocation2] sm:$0xff]
      %117 = vst [vmem:[#allocation10] sm:$0xff] %v116
    $region25: #{tpu_custom_call.1} parent=1 // pred_fallthru
      _
    // Predicated region
    $region26: #{tpu_custom_call.1} parent=1 // pred_check
      _
    $region27: #{tpu_custom_call.1} parent=1 // pred_check_branch
      %119 = sbr.rel (0) target = $region29
    $region28: #{tpu_custom_call.1} parent=1 // pred_region
      %121 = vsyncadd [#allocation7], 0
      %s123 = sshll.u32 [#allocation10], 4
      %s124 = int_to_ptr.vmem [resolvable:$true] %s123
      %s125 = sshll.u32 %s3, 4
      %s126 = int_to_ptr.hbm [resolvable:$true] %s125
      %128 = dma.vmem_to_hbm [thread:$0]  %s124, 128, %s126, [#allocation7]
    $region29: #{tpu_custom_call.1} parent=1 // pred_fallthru
      _
    // Predicated region
    $region30: #{tpu_custom_call.1} parent=1 // pred_check
      _
    $region31: #{tpu_custom_call.1} parent=1 // pred_check_branch
      %130 = sbr.rel (0) target = $region33
    $region32: #{tpu_custom_call.1} parent=1 // pred_region
      %132 = dma.done [#allocation7], 128
    $region33: #{tpu_custom_call.1} parent=1 // pred_fallthru
      _
    %133 = vsyncpa [#allocation6], 1
    %134 = vsyncpa [#allocation9], 1
    %135 = vsyncpa [#allocation7], 1

</llo_original>
